<compile_context>
chip_gen: v7x
topology: tpu7x:2x2x1
jax: 0.10.0
libtpu: 0.0.40
codegen_flags: <defaults>
</compile_context>

<pallas_src>
import functools

import jax
import jax.numpy as jnp
from jax.experimental import pallas as pl
from jax.experimental.pallas import tpu as pltpu

BN_EPS = 1e-5
_VMEM_LIMIT = 32 * 1024 * 1024  # safe scoped-VMEM budget on v5e/v6e/v7x


def _round_up(x, m):
    return ((x + m - 1) // m) * m


def _choose_tm(M, K, Cout, target_rows, in_bytes):
    """Pass-1 row tile: large, multiple of 8, divides M exactly if possible."""
    kp = _round_up(K, 128)
    cp = _round_up(Cout, 128)
    per_row = 2 * kp * in_bytes + 2 * cp * in_bytes + 16   # dbl-buffered in+out
    cap = max(8, ((16 << 20) // per_row) // 8 * 8)
    target = max(8, (min(target_rows, cap) // 8) * 8)
    if M <= target:
        return M, M                          # single full-extent tile
    for tile in range(target, 7, -8):        # largest mult-of-8 divisor <= target
        if M % tile == 0:
            return tile, M
    return target, _round_up(M, target)      # fallback: zero-pad rows


def _choose_nb(N, Ho, Wo, Po, Qo, Cout, y_bytes):
    """Images per pass-2 grid step, within a VMEM budget (amortizes step cost)."""
    cp = _round_up(Cout, 128)
    wp8 = _round_up(Wo + 2, 8)
    per = (2 * Ho * _round_up(Wo, 8) * cp * y_bytes      # y block, double-buffered
           + 2 * Po * _round_up(Qo, 8) * cp * 4          # o block, double-buffered
           + (Ho + 2) * wp8 * cp * 4                     # pad scratch
           + Po * wp8 * cp * 4)                          # hm scratch
    nb = int(max(1, min(N, (16 << 20) // max(per, 1))))
    while N % nb:
        nb -= 1
    return nb


# ---------------------------------------------------------------------------
# Pass 1: conv as one im2col matmul per tile + per-tile BN partial statistics
# ---------------------------------------------------------------------------
def _conv_stats_kernel(p_ref, w_ref, y_ref, stats_ref):
    # p_ref     : (TM, K)       im2col patch tile
    # w_ref     : (K, Cout)     folded conv weight (same block every step)
    # y_ref     : (TM, Cout)    conv output tile (stored in matmul dtype)
    # stats_ref : (1, 2, Cout)  per-tile [sum, sum_sq] partials (reduced in JAX)
    y = jnp.dot(p_ref[...], w_ref[...], preferred_element_type=jnp.float32)
    y_ref[...] = y.astype(y_ref.dtype)
    s = jnp.sum(y, axis=0, keepdims=True)
    q = jnp.sum(y * y, axis=0, keepdims=True)
    stats_ref[...] = jnp.concatenate([s, q], axis=0)[None]


# ---------------------------------------------------------------------------
# Pass 2: BN affine + ReLU + 3x3 stride-2 max-pool (NB images per grid step)
# ---------------------------------------------------------------------------
def _bn_relu_pool_kernel(y_ref, scale_ref, shift_ref, o_ref, pad_ref, hm_ref):
    # y_ref   : (NB, Ho, Wo, C)     conv output (bf16 or f32)
    # scale   : (1, C)              gamma * rsqrt(var + eps)
    # shift   : (1, C)              beta - mean * scale
    # o_ref   : (NB, Po, Qo, C)     pooled output
    # pad_ref : (NB, Ho+2, Wo+2, C) zero-bordered post-ReLU activation
    # hm_ref  : (NB, Po, Wo+2, C)   H-direction window max
    NB, Ho, Wo, C = y_ref.shape
    _, Po, Qo, _ = o_ref.shape
    Wp = Wo + 2

    # fused BN affine + ReLU (scale/shift precomputed from global batch stats)
    y = jnp.maximum(y_ref[...].astype(jnp.float32) * scale_ref[...]
                    + shift_ref[...], 0.0)

    # Zero ONLY the 1-pixel border (interior fully overwritten every step).
    # Not gated on program_id, so it stays correct under megacore "parallel"
    # sharding.  Zero pad == -inf pool pad because the values are post-ReLU.
    zrow = jnp.zeros((NB, 1, Wp, C), jnp.float32)
    zcol = jnp.zeros((NB, Ho, 1, C), jnp.float32)
    pad_ref[:, 0:1, :, :] = zrow
    pad_ref[:, Ho + 1:Ho + 2, :, :] = zrow
    pad_ref[:, 1:Ho + 1, 0:1, :] = zcol
    pad_ref[:, 1:Ho + 1, Wo + 1:Wo + 2, :] = zcol
    pad_ref[:, 1:Ho + 1, 1:Wo + 1, :] = y

    # H-direction 3-tap max FIRST: stride-2 decimation along an outer axis is
    # plain address math and shrinks the data before the sublane-strided step.
    hm_ref[...] = jnp.maximum(
        jnp.maximum(pad_ref[:, pl.ds(0, Po, 2), :, :],
                    pad_ref[:, pl.ds(1, Po, 2), :, :]),
        pad_ref[:, pl.ds(2, Po, 2), :, :])

    # W-direction 3-tap max with stride-2 decimation along the sublane axis,
    # now on the ~2x smaller (Po, Wo+2) intermediate; one dense store.
    o_ref[...] = jnp.maximum(
        jnp.maximum(hm_ref[:, :, pl.ds(0, Qo, 2), :],
                    hm_ref[:, :, pl.ds(1, Qo, 2), :]),
        hm_ref[:, :, pl.ds(2, Qo, 2), :]).astype(o_ref.dtype)


# ---------------------------------------------------------------------------
# Wrapper: NCHW in, NCHW out (matches the PyTorch module)
# ---------------------------------------------------------------------------
@functools.partial(jax.jit, static_argnames=("matmul_dtype", "tm", "nb"))
def shuffle_init_block(x_nchw, w_hwio, gamma, beta, *,
                       matmul_dtype=jnp.bfloat16, tm=8192, nb=None):
    N, Cin, H, W = x_nchw.shape
    Cout = w_hwio.shape[-1]
    Ho = (H - 1) // 2 + 1
    Wo = (W - 1) // 2 + 1
    Po = (Ho - 1) // 2 + 1
    Qo = (Wo - 1) // 2 + 1
    M = N * Ho * Wo
    K = 9 * Cin
    in_bytes = jnp.dtype(matmul_dtype).itemsize

    # ---- layout glue (JAX only): NHWC, zero pad, im2col, dtype cast --------
    # TODO(synk): in-kernel im2col with halo DMA would remove this slab's HBM
    # round trip; kept in the wrapper for robustness.
    x = jnp.transpose(x_nchw, (0, 2, 3, 1)).astype(matmul_dtype)
    xp = jnp.pad(x, ((0, 0), (1, 1), (1, 1), (0, 0)))
    taps = []
    for kh in range(3):
        for kw in range(3):
            taps.append(xp[:, kh:kh + 2 * Ho - 1:2, kw:kw + 2 * Wo - 1:2, :])
    patches = jnp.concatenate(taps, axis=-1).reshape(M, K)

    tile_m, m_pad = _choose_tm(M, K, Cout, tm, in_bytes)
    if m_pad != M:
        # Fallback only (M has no suitable divisor): zero rows contribute
        # nothing to sum/sum_sq and are sliced away before pass 2.
        patches = jnp.pad(patches, ((0, m_pad - M), (0, 0)))
    num_tiles = m_pad // tile_m

    w2d = w_hwio.reshape(K, Cout).astype(matmul_dtype)

    # ---- pass 1: tiled conv matmul + per-tile BN partial stats -------------
    conv_out, stats = pl.pallas_call(
        _conv_stats_kernel,
        out_shape=(jax.ShapeDtypeStruct((m_pad, Cout), matmul_dtype),
                   jax.ShapeDtypeStruct((num_tiles, 2, Cout), jnp.float32)),
        grid_spec=pltpu.PrefetchScalarGridSpec(
            num_scalar_prefetch=0,
            grid=(num_tiles,),
            in_specs=[pl.BlockSpec((tile_m, K), lambda i: (i, 0)),
                      pl.BlockSpec((K, Cout), lambda i: (0, 0))],
            out_specs=[pl.BlockSpec((tile_m, Cout), lambda i: (i, 0)),
                       pl.BlockSpec((1, 2, Cout), lambda i: (i, 0, 0))]),
        compiler_params=pltpu.CompilerParams(
            dimension_semantics=("parallel",),   # independent tiles -> megacore
            vmem_limit_bytes=_VMEM_LIMIT),
    )(patches, w2d)

    # ---- BN finalize on (Cout,) vectors: mean/var -> fused scale/shift -----
    # NOTE: single-pass E[x^2]-E[x]^2 can cancel in f32 when |mean| >> std;
    # acceptable for conv outputs of roughly-centered inputs (documented
    # assumption; the clamp guards the rsqrt).
    total = jnp.sum(stats, axis=0)               # (2, Cout)
    inv_m = 1.0 / M
    mean = total[0] * inv_m
    var = jnp.maximum(total[1] * inv_m - mean * mean, 0.0)
    scale = gamma.astype(jnp.float32) * jax.lax.rsqrt(var + BN_EPS)
    shift = beta.astype(jnp.float32) - mean * scale

    y_flat = conv_out if m_pad == M else conv_out[:M]
    y_nhwc = y_flat.reshape(N, Ho, Wo, Cout)

    NB = nb if nb is not None else _choose_nb(N, Ho, Wo, Po, Qo, Cout, in_bytes)
    assert N % NB == 0, (N, NB)

    # ---- pass 2: BN affine + ReLU + max-pool, NB images per grid step ------
    out_nhwc = pl.pallas_call(
        _bn_relu_pool_kernel,
        out_shape=jax.ShapeDtypeStruct((N, Po, Qo, Cout), jnp.float32),
        grid_spec=pltpu.PrefetchScalarGridSpec(
            num_scalar_prefetch=0,
            grid=(N // NB,),
            in_specs=[pl.BlockSpec((NB, Ho, Wo, Cout), lambda n: (n, 0, 0, 0)),
                      pl.BlockSpec((1, Cout), lambda n: (0, 0)),
                      pl.BlockSpec((1, Cout), lambda n: (0, 0))],
            out_specs=pl.BlockSpec((NB, Po, Qo, Cout), lambda n: (n, 0, 0, 0)),
            scratch_shapes=[pltpu.VMEM((NB, Ho + 2, Wo + 2, Cout), jnp.float32),
                            pltpu.VMEM((NB, Po, Wo + 2, Cout), jnp.float32)]),
        compiler_params=pltpu.CompilerParams(
            dimension_semantics=("parallel",),   # shards across TCs on v7x
            vmem_limit_bytes=_VMEM_LIMIT),
    )(y_nhwc, scale.reshape(1, Cout), shift.reshape(1, Cout))

    return jnp.transpose(out_nhwc, (0, 3, 1, 2))  # NHWC -> NCHW


# ---------------------------------------------------------------------------
# Pure-JAX reference with identical semantics (for validation)
# ---------------------------------------------------------------------------
def reference(x_nchw, w_hwio, gamma, beta):
    w_oihw = jnp.transpose(w_hwio, (3, 2, 0, 1))
    y = jax.lax.conv_general_dilated(
        x_nchw.astype(jnp.float32), w_oihw.astype(jnp.float32),
        window_strides=(2, 2), padding=((1, 1), (1, 1)),
        dimension_numbers=("NCHW", "OIHW", "NCHW"))
    mean = jnp.mean(y, axis=(0, 2, 3), keepdims=True)
    var = jnp.mean(jnp.square(y - mean), axis=(0, 2, 3), keepdims=True)
    y = (y - mean) * jax.lax.rsqrt(var + BN_EPS)
    y = y * gamma.reshape(1, -1, 1, 1) + beta.reshape(1, -1, 1, 1)
    y = jnp.maximum(y, 0.0)
    y = jax.lax.reduce_window(y, -jnp.inf, jax.lax.max,
                              (1, 1, 3, 3), (1, 1, 2, 2),
                              ((0, 0), (0, 0), (1, 1), (1, 1)))
    return y


if __name__ == "__main__":
    key = jax.random.PRNGKey(0)
    kx, kw, kx2, kw2 = jax.random.split(key, 4)

    # --- case 1: strict f32 check; tm=32 -> 4 pass-1 tiles exercising the
    # parallel partial-stats reduction; default NB batches both images.
    N, Cin, Cout, H, W = 2, 4, 8, 16, 16
    x = jax.random.normal(kx, (N, Cin, H, W), jnp.float32)
    w = jax.random.normal(kw, (3, 3, Cin, Cout), jnp.float32) * 0.1
    gamma = jnp.ones((Cout,), jnp.float32)    # nn.BatchNorm2d default init
    beta = jnp.zeros((Cout,), jnp.float32)
    ref = reference(x, w, gamma, beta)

    out_f32 = jax.block_until_ready(
        shuffle_init_block(x, w, gamma, beta, matmul_dtype=jnp.float32, tm=32))
    assert out_f32.shape == (N, Cout, 4, 4), out_f32.shape
    assert jnp.allclose(out_f32, ref, atol=1e-4, rtol=1e-4), \
        float(jnp.max(jnp.abs(out_f32 - ref)))

    # --- case 2: production bf16 path (bf16 matmul feed + bf16 conv_out);
    # nb=1 forces a 2-step pass-2 grid (per-step border re-zeroing exercised).
    out_bf16 = jax.block_until_ready(
        shuffle_init_block(x, w, gamma, beta, matmul_dtype=jnp.bfloat16, nb=1))
    assert out_bf16.shape == (N, Cout, 4, 4), out_bf16.shape
    assert jnp.allclose(out_bf16, ref, atol=5e-2, rtol=5e-2), \
        float(jnp.max(jnp.abs(out_bf16 - ref)))

    # --- case 3: odd spatial dims, non-lane-aligned channels, and the pass-1
    # zero-row padding fallback (M=49 has no mult-of-8 divisor <= tm=16).
    N3, Cin3, Cout3, H3, W3 = 1, 3, 5, 14, 14
    x3 = jax.random.normal(kx2, (N3, Cin3, H3, W3), jnp.float32)
    w3 = jax.random.normal(kw2, (3, 3, Cin3, Cout3), jnp.float32) * 0.1
    g3 = jnp.ones((Cout3,), jnp.float32)
    b3 = jnp.zeros((Cout3,), jnp.float32)
    ref3 = reference(x3, w3, g3, b3)
    out3 = jax.block_until_ready(
        shuffle_init_block(x3, w3, g3, b3, matmul_dtype=jnp.bfloat16, tm=16))
    assert out3.shape == (N3, Cout3, 4, 4), out3.shape
    assert jnp.allclose(out3, ref3, atol=5e-2, rtol=5e-2), \
        float(jnp.max(jnp.abs(out3 - ref3)))

    print("KERNEL_OK")
</pallas_src>

<mosaic_0001>
module attributes {stable_mosaic.version = 11 : i64} {
  func.func @_conv_stats_kernel(%arg0: i32, %arg1: memref<32x36xf32, #tpu.memory_space<vmem>>, %arg2: memref<36x8xf32, #tpu.memory_space<vmem>>, %arg3: memref<32x8xf32, #tpu.memory_space<vmem>>, %arg4: memref<1x2x8xf32, #tpu.memory_space<vmem>>) attributes {dimension_semantics = [#tpu.dimension_semantics<parallel>], iteration_bounds = array<i64: 4>, scalar_prefetch = 0 : i64, scratch_operands = 0 : i64, tpu.core_type = #tpu.core_type<tc>, window_params = [{transform_indices = @transform_0, window_bounds = array<i64: 32, 36>}, {pipeline_mode = #tpu.pipeline_mode<synchronous>, transform_indices = @transform_1, window_bounds = array<i64: 36, 8>}, {transform_indices = @transform_2, window_bounds = array<i64: 32, 8>}, {transform_indices = @transform_3, window_bounds = array<i64: 1, 2, 8>}]} {
    %c0 = arith.constant 0 : index
    %c0_0 = arith.constant 0 : index
    %0 = vector.load %arg1[%c0, %c0_0] : memref<32x36xf32, #tpu.memory_space<vmem>>, vector<32x36xf32>
    %c0_1 = arith.constant 0 : index
    %c0_2 = arith.constant 0 : index
    %1 = vector.load %arg2[%c0_1, %c0_2] : memref<36x8xf32, #tpu.memory_space<vmem>>, vector<36x8xf32>
    %cst = arith.constant dense<0.000000e+00> : vector<32x8xf32>
    %2 = tpu.matmul %0, %1, %cst {dimension_numbers = #tpu.dot_dimension_numbers<[1], [0], [0], [1], [0, 0, 1, 1], [], []>} : vector<32x36xf32>, vector<36x8xf32>, vector<32x8xf32> -> vector<32x8xf32>
    %c0_3 = arith.constant 0 : index
    %c0_4 = arith.constant 0 : index
    %3 = vector.load %arg3[%c0_3, %c0_4] : memref<32x8xf32, #tpu.memory_space<vmem>>, vector<32x8xf32>
    tpu.vector_store %arg3[%c0_3, %c0_4], %2 {strides = array<i32>} : memref<32x8xf32, #tpu.memory_space<vmem>>, vector<32x8xf32>,
    %cst_5 = arith.constant dense<0.000000e+00> : vector<8xf32>
    %4 = vector.multi_reduction <add>, %2, %cst_5 [0] : vector<32x8xf32> to vector<8xf32>
    %5 = vector.shape_cast %4 : vector<8xf32> to vector<1x8xf32>
    %6 = arith.mulf %2, %2 : vector<32x8xf32>
    %cst_6 = arith.constant dense<0.000000e+00> : vector<8xf32>
    %7 = vector.multi_reduction <add>, %6, %cst_6 [0] : vector<32x8xf32> to vector<8xf32>
    %8 = vector.shape_cast %7 : vector<8xf32> to vector<1x8xf32>
    %9 = tpu.concatenate %5, %8 in 0 : vector<1x8xf32>, vector<1x8xf32> -> vector<2x8xf32>
    %10 = vector.shape_cast %9 : vector<2x8xf32> to vector<1x2x8xf32>
    %c0_7 = arith.constant 0 : index
    %c0_8 = arith.constant 0 : index
    %c0_9 = arith.constant 0 : index
    %11 = vector.load %arg4[%c0_7, %c0_8, %c0_9] : memref<1x2x8xf32, #tpu.memory_space<vmem>>, vector<1x2x8xf32>
    tpu.vector_store %arg4[%c0_7, %c0_8, %c0_9], %10 {strides = array<i32>} : memref<1x2x8xf32, #tpu.memory_space<vmem>>, vector<1x2x8xf32>,
    return
  }
  func.func @transform_0(%arg0: i32) -> (i32, i32) {
    %c0_i32 = arith.constant 0 : i32
    %c0_i32_0 = arith.constant 0 : i32
    return %arg0, %c0_i32 : i32, i32
  }
  func.func @transform_1(%arg0: i32) -> (i32, i32) {
    %c0_i32 = arith.constant 0 : i32
    %c0_i32_0 = arith.constant 0 : i32
    %c0_i32_1 = arith.constant 0 : i32
    return %c0_i32, %c0_i32_0 : i32, i32
  }
  func.func @transform_2(%arg0: i32) -> (i32, i32) {
    %c0_i32 = arith.constant 0 : i32
    %c0_i32_0 = arith.constant 0 : i32
    return %arg0, %c0_i32 : i32, i32
  }
  func.func @transform_3(%arg0: i32) -> (i32, i32, i32) {
    %c0_i32 = arith.constant 0 : i32
    %c0_i32_0 = arith.constant 0 : i32
    %c0_i32_1 = arith.constant 0 : i32
    return %arg0, %c0_i32, %c0_i32_0 : i32, i32, i32
  }
}

module attributes {stable_mosaic.version = 11 : i64} {
  func.func @_bn_relu_pool_kernel(%arg0: i32, %arg1: memref<2x8x8x8xf32, #tpu.memory_space<vmem>>, %arg2: memref<1x8xf32, #tpu.memory_space<vmem>>, %arg3: memref<1x8xf32, #tpu.memory_space<vmem>>, %arg4: memref<2x4x4x8xf32, #tpu.memory_space<vmem>>, %arg5: memref<2x10x10x8xf32, #tpu.memory_space<vmem>>, %arg6: memref<2x4x10x8xf32, #tpu.memory_space<vmem>>) attributes {dimension_semantics = [#tpu.dimension_semantics<parallel>], iteration_bounds = array<i64: 1>, scalar_prefetch = 0 : i64, scratch_operands = 2 : i64, tpu.core_type = #tpu.core_type<tc>, window_params = [{transform_indices = @transform_0, window_bounds = array<i64: 2, 8, 8, 8>}, {pipeline_mode = #tpu.pipeline_mode<synchronous>, transform_indices = @transform_1, window_bounds = array<i64: 1, 8>}, {pipeline_mode = #tpu.pipeline_mode<synchronous>, transform_indices = @transform_2, window_bounds = array<i64: 1, 8>}, {transform_indices = @transform_3, window_bounds = array<i64: 2, 4, 4, 8>}]} {
    %c0 = arith.constant 0 : index
    %c0_0 = arith.constant 0 : index
    %c0_1 = arith.constant 0 : index
    %c0_2 = arith.constant 0 : index
    %0 = vector.load %arg1[%c0, %c0_0, %c0_1, %c0_2] : memref<2x8x8x8xf32, #tpu.memory_space<vmem>>, vector<2x8x8x8xf32>
    %c0_3 = arith.constant 0 : index
    %c0_4 = arith.constant 0 : index
    %1 = vector.load %arg2[%c0_3, %c0_4] : memref<1x8xf32, #tpu.memory_space<vmem>>, vector<1x8xf32>
    %2 = vector.shape_cast %1 : vector<1x8xf32> to vector<1x1x1x8xf32>
    %3 = vector.broadcast %2 : vector<1x1x1x8xf32> to vector<2x8x8x8xf32>
    %4 = arith.mulf %0, %3 : vector<2x8x8x8xf32>
    %c0_5 = arith.constant 0 : index
    %c0_6 = arith.constant 0 : index
    %5 = vector.load %arg3[%c0_5, %c0_6] : memref<1x8xf32, #tpu.memory_space<vmem>>, vector<1x8xf32>
    %6 = vector.shape_cast %5 : vector<1x8xf32> to vector<1x1x1x8xf32>
    %7 = vector.broadcast %6 : vector<1x1x1x8xf32> to vector<2x8x8x8xf32>
    %8 = arith.addf %4, %7 : vector<2x8x8x8xf32>
    %cst = arith.constant 0.000000e+00 : f32
    %9 = vector.broadcast %cst : f32 to vector<2x8x8x8xf32>
    %10 = arith.maximumf %8, %9 : vector<2x8x8x8xf32>
    %cst_7 = arith.constant 0.000000e+00 : f32
    %11 = vector.broadcast %cst_7 : f32 to vector<2x1x10x8xf32>
    %cst_8 = arith.constant 0.000000e+00 : f32
    %12 = vector.broadcast %cst_8 : f32 to vector<2x8x1x8xf32>
    %c0_9 = arith.constant 0 : index
    %c0_10 = arith.constant 0 : index
    %c0_11 = arith.constant 0 : index
    %c0_12 = arith.constant 0 : index
    %13 = vector.load %arg5[%c0_9, %c0_10, %c0_11, %c0_12] : memref<2x10x10x8xf32, #tpu.memory_space<vmem>>, vector<2x1x10x8xf32>
    tpu.vector_store %arg5[%c0_9, %c0_10, %c0_11, %c0_12], %11 {strides = array<i32>} : memref<2x10x10x8xf32, #tpu.memory_space<vmem>>, vector<2x1x10x8xf32>,
    %c0_13 = arith.constant 0 : index
    %c9 = arith.constant 9 : index
    %c0_14 = arith.constant 0 : index
    %c0_15 = arith.constant 0 : index
    %14 = vector.load %arg5[%c0_13, %c9, %c0_14, %c0_15] : memref<2x10x10x8xf32, #tpu.memory_space<vmem>>, vector<2x1x10x8xf32>
    tpu.vector_store %arg5[%c0_13, %c9, %c0_14, %c0_15], %11 {strides = array<i32>} : memref<2x10x10x8xf32, #tpu.memory_space<vmem>>, vector<2x1x10x8xf32>,
    %c0_16 = arith.constant 0 : index
    %c1 = arith.constant 1 : index
    %c0_17 = arith.constant 0 : index
    %c0_18 = arith.constant 0 : index
    %15 = vector.load %arg5[%c0_16, %c1, %c0_17, %c0_18] : memref<2x10x10x8xf32, #tpu.memory_space<vmem>>, vector<2x8x1x8xf32>
    tpu.vector_store %arg5[%c0_16, %c1, %c0_17, %c0_18], %12 {strides = array<i32>} : memref<2x10x10x8xf32, #tpu.memory_space<vmem>>, vector<2x8x1x8xf32>,
    %c0_19 = arith.constant 0 : index
    %c1_20 = arith.constant 1 : index
    %c9_21 = arith.constant 9 : index
    %c0_22 = arith.constant 0 : index
    %16 = vector.load %arg5[%c0_19, %c1_20, %c9_21, %c0_22] : memref<2x10x10x8xf32, #tpu.memory_space<vmem>>, vector<2x8x1x8xf32>
    tpu.vector_store %arg5[%c0_19, %c1_20, %c9_21, %c0_22], %12 {strides = array<i32>} : memref<2x10x10x8xf32, #tpu.memory_space<vmem>>, vector<2x8x1x8xf32>,
    %c0_23 = arith.constant 0 : index
    %c1_24 = arith.constant 1 : index
    %c1_25 = arith.constant 1 : index
    %c0_26 = arith.constant 0 : index
    %17 = vector.load %arg5[%c0_23, %c1_24, %c1_25, %c0_26] : memref<2x10x10x8xf32, #tpu.memory_space<vmem>>, vector<2x8x8x8xf32>
    tpu.vector_store %arg5[%c0_23, %c1_24, %c1_25, %c0_26], %10 {strides = array<i32>} : memref<2x10x10x8xf32, #tpu.memory_space<vmem>>, vector<2x8x8x8xf32>,
    %c0_27 = arith.constant 0 : index
    %c0_28 = arith.constant 0 : index
    %c0_29 = arith.constant 0 : index
    %c0_30 = arith.constant 0 : index
    %18 = tpu.strided_load %arg5[%c0_27, %c0_28, %c0_29, %c0_30] {strides = array<i32: 1, 2, 1, 1>} : memref<2x10x10x8xf32, #tpu.memory_space<vmem>>, vector<2x4x10x8xf32>
    %c0_31 = arith.constant 0 : index
    %c1_32 = arith.constant 1 : index
    %c0_33 = arith.constant 0 : index
    %c0_34 = arith.constant 0 : index
    %19 = tpu.strided_load %arg5[%c0_31, %c1_32, %c0_33, %c0_34] {strides = array<i32: 1, 2, 1, 1>} : memref<2x10x10x8xf32, #tpu.memory_space<vmem>>, vector<2x4x10x8xf32>
    %20 = arith.maximumf %18, %19 : vector<2x4x10x8xf32>
    %c0_35 = arith.constant 0 : index
    %c2 = arith.constant 2 : index
    %c0_36 = arith.constant 0 : index
    %c0_37 = arith.constant 0 : index
    %21 = tpu.strided_load %arg5[%c0_35, %c2, %c0_36, %c0_37] {strides = array<i32: 1, 2, 1, 1>} : memref<2x10x10x8xf32, #tpu.memory_space<vmem>>, vector<2x4x10x8xf32>
    %22 = arith.maximumf %20, %21 : vector<2x4x10x8xf32>
    %c0_38 = arith.constant 0 : index
    %c0_39 = arith.constant 0 : index
    %c0_40 = arith.constant 0 : index
    %c0_41 = arith.constant 0 : index
    %23 = vector.load %arg6[%c0_38, %c0_39, %c0_40, %c0_41] : memref<2x4x10x8xf32, #tpu.memory_space<vmem>>, vector<2x4x10x8xf32>
    tpu.vector_store %arg6[%c0_38, %c0_39, %c0_40, %c0_41], %22 {strides = array<i32>} : memref<2x4x10x8xf32, #tpu.memory_space<vmem>>, vector<2x4x10x8xf32>,
    %c0_42 = arith.constant 0 : index
    %c0_43 = arith.constant 0 : index
    %c0_44 = arith.constant 0 : index
    %c0_45 = arith.constant 0 : index
    %24 = tpu.strided_load %arg6[%c0_42, %c0_43, %c0_44, %c0_45] {strides = array<i32: 1, 1, 2, 1>} : memref<2x4x10x8xf32, #tpu.memory_space<vmem>>, vector<2x4x4x8xf32>
    %c0_46 = arith.constant 0 : index
    %c0_47 = arith.constant 0 : index
    %c1_48 = arith.constant 1 : index
    %c0_49 = arith.constant 0 : index
    %25 = tpu.strided_load %arg6[%c0_46, %c0_47, %c1_48, %c0_49] {strides = array<i32: 1, 1, 2, 1>} : memref<2x4x10x8xf32, #tpu.memory_space<vmem>>, vector<2x4x4x8xf32>
    %26 = arith.maximumf %24, %25 : vector<2x4x4x8xf32>
    %c0_50 = arith.constant 0 : index
    %c0_51 = arith.constant 0 : index
    %c2_52 = arith.constant 2 : index
    %c0_53 = arith.constant 0 : index
    %27 = tpu.strided_load %arg6[%c0_50, %c0_51, %c2_52, %c0_53] {strides = array<i32: 1, 1, 2, 1>} : memref<2x4x10x8xf32, #tpu.memory_space<vmem>>, vector<2x4x4x8xf32>
    %28 = arith.maximumf %26, %27 : vector<2x4x4x8xf32>
    %c0_54 = arith.constant 0 : index
    %c0_55 = arith.constant 0 : index
    %c0_56 = arith.constant 0 : index
    %c0_57 = arith.constant 0 : index
    %29 = vector.load %arg4[%c0_54, %c0_55, %c0_56, %c0_57] : memref<2x4x4x8xf32, #tpu.memory_space<vmem>>, vector<2x4x4x8xf32>
    tpu.vector_store %arg4[%c0_54, %c0_55, %c0_56, %c0_57], %28 {strides = array<i32>} : memref<2x4x4x8xf32, #tpu.memory_space<vmem>>, vector<2x4x4x8xf32>,
    return
  }
  func.func @transform_0(%arg0: i32) -> (i32, i32, i32, i32) {
    %c0_i32 = arith.constant 0 : i32
    %c0_i32_0 = arith.constant 0 : i32
    %c0_i32_1 = arith.constant 0 : i32
    %c0_i32_2 = arith.constant 0 : i32
    return %arg0, %c0_i32, %c0_i32_0, %c0_i32_1 : i32, i32, i32, i32
  }
  func.func @transform_1(%arg0: i32) -> (i32, i32) {
    %c0_i32 = arith.constant 0 : i32
    %c0_i32_0 = arith.constant 0 : i32
    %c0_i32_1 = arith.constant 0 : i32
    return %c0_i32, %c0_i32_0 : i32, i32
  }
  func.func @transform_2(%arg0: i32) -> (i32, i32) {
    %c0_i32 = arith.constant 0 : i32
    %c0_i32_0 = arith.constant 0 : i32
    %c0_i32_1 = arith.constant 0 : i32
    return %c0_i32, %c0_i32_0 : i32, i32
  }
  func.func @transform_3(%arg0: i32) -> (i32, i32, i32, i32) {
    %c0_i32 = arith.constant 0 : i32
    %c0_i32_0 = arith.constant 0 : i32
    %c0_i32_1 = arith.constant 0 : i32
    %c0_i32_2 = arith.constant 0 : i32
    return %arg0, %c0_i32, %c0_i32_0, %c0_i32_1 : i32, i32, i32, i32
  }
}

</mosaic_0001>

<llo_original>
// kernel: shuffle_init_block.2
$region0: #{shuffle_init_block.2}
  #allocation0 [shape = 'u32[]', space=smem, size = 0x4, offset = 0x4, fixed_abs, tag = 'smem constant byte address 0x4 - core index']
  #allocation1 [shape = 'u32[144,128]{1,0:T(1,128)}', space=vmem, size = 0x12000, scoped, tag = 'internal scratch']
  %s0 = inlined_call_operand.vmem [shape: f32[128,36], index: 0, kind: input, shape index: {}]
  %s1 = inlined_call_operand.vmem [shape: f32[36,8], index: 1, kind: input, shape index: {}]
  %s2 = inlined_call_operand.vmem [shape: f32[128,8], index: 2, kind: output, shape index: {0}]
  %s3 = inlined_call_operand.vmem [shape: f32[4,2,8], index: 3, kind: output, shape index: {1}]
  %4 = xla_tuple %s2, %s3
  %s5 = sld [smem:[#allocation0]]
  $region49: #{shuffle_init_block.2} parent=0
    _
  %s7 = ssub.s32 1, %s5
  %s8 = scalar_select 0, %s7, %s5
  loop: start=0, step=1, limit=6
  $region2: #{shuffle_init_block.2} parent=0 // loop_pre_header
    _
  $region3: #{shuffle_init_block.2} parent=0 // loop_header
    %s10 = sphi 0, %s14
    %p11 = scmp.ge.s32.totalorder %s10, 6
    %s20 = sphi 0, %s22
    %s23 = sphi 0, %s20
    %s24 = sphi 0, %s23
    %s40 = sphi 0, %s24
    %s44 = sphi 0, %s44
    %s46 = sphi 0, %s44
    %s47 = sphi 0, %s46
    %s61 = sphi 0, %s47
    %s67 = sphi 0, %s69
    %s70 = sphi 0, %s67
    %s71 = sphi 0, %s70
    %s87 = sphi 0, %s71
    %s93 = sphi 0, %s95
    %s96 = sphi 0, %s93
    %s97 = sphi 0, %s96
    %s113 = sphi 0, %s97
  $region4: #{shuffle_init_block.2} parent=0 // loop_header_branch
    %13 = sbr.rel (%p11) target = $region8
  $region5: #{shuffle_init_block.2} parent=0 // loop_body
    %s15 = ssub.s32 %s10, 1
    %s16 = ssub.s32 %s10, 2
    %s17 = sadd.s32 %s10, 1
    %s18 = ssub.s32 %s10, %s17
    %p19 = scmp.eq.s32.totalorder %s18, 0
    %s21 = sadd.s32 %s20, 1
    %s22 = scalar_select %p19, %s20, %s21
    %p25 = pneg %p19
    %p26 = scmp.eq.s32.totalorder %s10, 3
    %p27 = por %p25, %p26
    %p28 = scmp.ne.s32.totalorder %s20, %s23
    %p29 = scmp.eq.s32.totalorder %s10, 0
    %p30 = por %p28, %p29
    %p31 = scmp.ne.s32.totalorder %s20, %s23
    %p32 = scmp.eq.s32.totalorder %s15, 3
    %p33 = por %p31, %p32
    %p34 = scmp.ne.s32.totalorder %s23, %s24
    %p35 = scmp.eq.s32.totalorder %s15, 0
    %p36 = por %p34, %p35
    %p37 = scmp.ne.s32.totalorder %s23, %s24
    %p38 = scmp.eq.s32.totalorder %s16, 3
    %p39 = por %p37, %p38
    %p41 = scmp.ne.s32.totalorder %s24, %s40
    %p42 = scmp.eq.s32.totalorder %s16, 0
    %p43 = por %p41, %p42
    %s45 = sadd.s32 %s44, 1
    %p48 = scmp.eq.s32.totalorder %s10, 3
    %p49 = scmp.ne.s32.totalorder %s44, %s46
    %p50 = scmp.eq.s32.totalorder %s10, 0
    %p51 = por %p49, %p50
    %p52 = scmp.ne.s32.totalorder %s44, %s46
    %p53 = scmp.eq.s32.totalorder %s15, 3
    %p54 = por %p52, %p53
    %p55 = scmp.ne.s32.totalorder %s46, %s47
    %p56 = scmp.eq.s32.totalorder %s15, 0
    %p57 = por %p55, %p56
    %p58 = scmp.ne.s32.totalorder %s46, %s47
    %p59 = scmp.eq.s32.totalorder %s16, 3
    %p60 = por %p58, %p59
    %p62 = scmp.ne.s32.totalorder %s47, %s61
    %p63 = scmp.eq.s32.totalorder %s16, 0
    %p64 = por %p62, %p63
    %s65 = ssub.s32 %s10, %s17
    %p66 = scmp.eq.s32.totalorder %s65, 0
    %s68 = sadd.s32 %s67, 1
    %s69 = scalar_select %p66, %s67, %s68
    %p72 = pneg %p66
    %p73 = scmp.eq.s32.totalorder %s10, 3
    %p74 = por %p72, %p73
    %p75 = scmp.ne.s32.totalorder %s67, %s70
    %p76 = scmp.eq.s32.totalorder %s10, 0
    %p77 = por %p75, %p76
    %p78 = scmp.ne.s32.totalorder %s67, %s70
    %p79 = scmp.eq.s32.totalorder %s15, 3
    %p80 = por %p78, %p79
    %p81 = scmp.ne.s32.totalorder %s70, %s71
    %p82 = scmp.eq.s32.totalorder %s15, 0
    %p83 = por %p81, %p82
    %p84 = scmp.ne.s32.totalorder %s70, %s71
    %p85 = scmp.eq.s32.totalorder %s16, 3
    %p86 = por %p84, %p85
    %p88 = scmp.ne.s32.totalorder %s71, %s87
    %p89 = scmp.eq.s32.totalorder %s16, 0
    %p90 = por %p88, %p89
    %s91 = ssub.s32 %s10, %s17
    %p92 = scmp.eq.s32.totalorder %s91, 0
    %s94 = sadd.s32 %s93, 1
    %s95 = scalar_select %p92, %s93, %s94
    %p98 = pneg %p92
    %p99 = scmp.eq.s32.totalorder %s10, 3
    %p100 = por %p98, %p99
    %p101 = scmp.ne.s32.totalorder %s93, %s96
    %p102 = scmp.eq.s32.totalorder %s10, 0
    %p103 = por %p101, %p102
    %p104 = scmp.ne.s32.totalorder %s93, %s96
    %p105 = scmp.eq.s32.totalorder %s15, 3
    %p106 = por %p104, %p105
    %p107 = scmp.ne.s32.totalorder %s96, %s97
    %p108 = scmp.eq.s32.totalorder %s15, 0
    %p109 = por %p107, %p108
    %p110 = scmp.ne.s32.totalorder %s96, %s97
    %p111 = scmp.eq.s32.totalorder %s16, 3
    %p112 = por %p110, %p111
    %p114 = scmp.ne.s32.totalorder %s97, %s113
    %p115 = scmp.eq.s32.totalorder %s16, 0
    %p116 = por %p114, %p115
    %p117 = scmp.le.s32.totalorder 1, %s10
    %p118 = scmp.lt.s32.totalorder %s10, 5
    %p119 = pnand %p117, %p118
    %p120 = pneg %p119
    // Predicated region
    $region9: #{shuffle_init_block.2} parent=5 // pred_check
      _
    $region10: #{shuffle_init_block.2} parent=5 // pred_check_branch
      %122 = sbr.rel (%p119) target = $region12
    $region11: #{shuffle_init_block.2} parent=5 // pred_region
      %s123 = ssub.s32 %s10, 1
      // Predicated region
      $region13: #{shuffle_init_block.2} parent=11 // pred_check
        %p124 = pneg %p57
      $region14: #{shuffle_init_block.2} parent=11 // pred_check_branch
        %126 = sbr.rel (%p124) target = $region16
      $region15: #{shuffle_init_block.2} parent=11 // pred_region
        _
      $region16: #{shuffle_init_block.2} parent=11 // pred_fallthru
        _
    $region12: #{shuffle_init_block.2} parent=5 // pred_fallthru
      _
    %p127 = scmp.lt.s32.totalorder %s10, 4
    // Predicated region
    $region17: #{shuffle_init_block.2} parent=5 // pred_check
      %p128 = pneg %p127
    $region18: #{shuffle_init_block.2} parent=5 // pred_check_branch
      %130 = sbr.rel (%p128) target = $region20
    $region19: #{shuffle_init_block.2} parent=5 // pred_region
      // Predicated region
      $region21: #{shuffle_init_block.2} parent=19 // pred_check
        %p131 = pneg %p30
      $region22: #{shuffle_init_block.2} parent=19 // pred_check_branch
        %133 = sbr.rel (%p131) target = $region24
      $region23: #{shuffle_init_block.2} parent=19 // pred_region
        %s134 = smul.u32 4, %s10
        %p135 = scmp.lt.s32.totalorder %s134, 15
        %s136 = scalar_select %p135, %s134, 15
        %s137 = smul.addr %s136, 8
        %s138 = scalar_lea.vmem %s0, %s137
        %s139 = smul.u32 4, %s10
      $region24: #{shuffle_init_block.2} parent=19 // pred_fallthru
        _
    $region20: #{shuffle_init_block.2} parent=5 // pred_fallthru
      _
    %p140 = scmp.le.s32.totalorder 1, %s10
    %p141 = scmp.lt.s32.totalorder %s10, 5
    %p142 = pnand %p140, %p141
    %p143 = pneg %p142
    // Predicated region
    $region25: #{shuffle_init_block.2} parent=5 // pred_check
      _
    $region26: #{shuffle_init_block.2} parent=5 // pred_check_branch
      %145 = sbr.rel (%p142) target = $region28
    $region27: #{shuffle_init_block.2} parent=5 // pred_region
      %s146 = ssub.s32 %s10, 1
      %s147 = smul.u32 4, %s15
      %p148 = scmp.lt.s32.totalorder %s147, 15
      %s149 = scalar_select %p148, %s147, 15
      %s150 = smul.addr %s149, 8
      %s151 = scalar_lea.vmem %s0, %s150
      %p152 = pneg %p36
      %p153 = pneg %p33
      %p154 = pneg %p57
      %p155 = pneg %p54
      %p156 = pneg %p83
      %p157 = pneg %p80
      %s158 = smul.u32 4, %s15
      %p159 = scmp.lt.s32.totalorder %s158, 15
      %s160 = scalar_select %p159, %s158, 15
      %s161 = smul.addr %s160, 8
      %s162 = scalar_lea.vmem %s2, %s161
      %p163 = pneg %p109
      %p164 = pneg %p106
      %p165 = scmp.lt.s32.totalorder %s15, 3
      %s166 = scalar_select %p165, %s15, 3
      %s167 = smul.addr %s166, 2
      %s168 = scalar_lea.vmem %s3, %s167
      %s169 = smul.u32 4, %s15
      %p170 = scmp.lt.s32.totalorder %s169, 15
      %s171 = scalar_select %p170, %s169, 15
      %s172 = smul.addr %s171, 8
      %s173 = scalar_lea.vmem %s0, %s172
      %s174 = smul.u32 4, %s15
      %s175 = smul.u32 4, %s15
      %p176 = scmp.lt.s32.totalorder %s175, 15
      %s177 = scalar_select %p176, %s175, 15
      %s178 = smul.addr %s177, 8
      %s179 = scalar_lea.vmem %s2, %s178
      %s180 = smul.u32 4, %s15
      %p181 = scmp.lt.s32.totalorder %s15, 3
      %s182 = scalar_select %p181, %s15, 3
      %s183 = smul.addr %s182, 2
      %s184 = scalar_lea.vmem %s3, %s183
      %v185 = vld [vmem:[%s173] sm:$0xff]
      %v186 = vld [vmem:[%s173 + $0x8] sm:$0xff]
      %v187 = vld [vmem:[%s173 + $0x10] sm:$0xff]
      %v188 = vld [vmem:[%s173 + $0x18] sm:$0xff]
      %v189 = vld [vmem:[%s1] sm:$0xff]
      %v190 = vld [vmem:[%s1 + $0x8] sm:$0xff]
      %v191 = vld [vmem:[%s1 + $0x10] sm:$0xff]
      %v192 = vld [vmem:[%s1 + $0x18] sm:$0xff]
      %v193 = vld [vmem:[%s1 + $0x20] sm:$0xf]
      %vm194 = vcmask 293888
      %v196 = vsel %vm194, %v185, 0
      %v199 = vsel %vm194, %v186, 0
      %v202 = vsel %vm194, %v187, 0
      %v205 = vsel %vm194, %v188, 0
      %vm207 = vcmask 1043456
      %v209 = vsel %vm207, %v193, 0
      %211 = vmatprep.subr.mxu0 0.0
      %212 = vmatpush1.msra.mxu0 %v189
      %213 = vmatprep.subr.mxu0 0.0
      %214 = vmatpush1.msra.mxu0 %v190
      %215 = vmatprep.subr.mxu0 0.0
      %216 = vmatpush1.msra.mxu0 %v191
      %217 = vmatprep.subr.mxu0 0.0
      %218 = vmatpush1.msra.mxu0 %v192
      %219 = vmatprep.subr.mxu0 0.0
      %220 = vmatpush1.msra.mxu0 %v209
      %221 = vmatprep.subr.mxu0 0.0
      %222 = vmatpush1.msra.mxu0 0.0
      %223 = vmatprep.subr.mxu0 0.0
      %224 = vmatpush1.msra.mxu0 0.0
      %225 = vmatprep.subr.mxu0 0.0
      %226 = vmatpush1.msra.mxu0 0.0
      %227 = vmatprep.subr.mxu0 0.0
      %228 = vmatpush1.msra.mxu0 0.0
      %229 = vmatprep.subr.mxu0 0.0
      %230 = vmatpush1.msra.mxu0 0.0
      %231 = vmatprep.subr.mxu0 0.0
      %232 = vmatpush1.msra.mxu0 0.0
      %233 = vmatprep.subr.mxu0 0.0
      %234 = vmatpush1.msra.mxu0 0.0
      %235 = vmatprep.subr.mxu0 0.0
      %236 = vmatpush1.msra.mxu0 0.0
      %237 = vmatprep.subr.mxu0 0.0
      %238 = vmatpush1.msra.mxu0 0.0
      %239 = vmatprep.subr.mxu0 0.0
      %240 = vmatpush1.msra.mxu0 0.0
      %241 = vmatprep.subr.mxu0 0.0
      %242 = vmatpush1.msra.mxu0 0.0
      %243 = vmatprep.subr.mxu0 0.0
      %244 = vmatpush1.msra.mxu0 0.0
      %245 = vmatprep.subr.mxu0 0.0
      %246 = vmatpush1.msra.mxu0 0.0
      %247 = vmatprep.subr.mxu0 0.0
      %248 = vmatpush1.msra.mxu0 0.0
      %249 = vmatprep.subr.mxu0 0.0
      %250 = vmatpush1.msra.mxu0 0.0
      %251 = vmatprep.subr.mxu0 0.0
      %252 = vmatpush1.msra.mxu0 0.0
      %253 = vmatprep.subr.mxu0 0.0
      %254 = vmatpush1.msra.mxu0 0.0
      %255 = vmatprep.subr.mxu0 0.0
      %256 = vmatpush1.msra.mxu0 0.0
      %257 = vmatprep.subr.mxu0 0.0
      %258 = vmatpush1.msra.mxu0 0.0
      %259 = vmatprep.subr.mxu0 0.0
      %260 = vmatpush1.msra.mxu0 0.0
      %261 = vmatprep.subr.mxu0 0.0
      %262 = vmatpush1.msra.mxu0 0.0
      %263 = vmatprep.subr.mxu0 0.0
      %264 = vmatpush1.msra.mxu0 0.0
      %265 = vmatprep.subr.mxu0 0.0
      %266 = vmatpush1.msra.mxu0 0.0
      %267 = vmatprep.subr.mxu0 0.0
      %268 = vmatpush1.msra.mxu0 0.0
      %269 = vmatprep.subr.mxu0 0.0
      %270 = vmatpush1.msra.mxu0 0.0
      %271 = vmatprep.subr.mxu0 0.0
      %272 = vmatpush1.msra.mxu0 0.0
      %273 = vmatprep.subr.mxu0 0.0
      %274 = vmatpush1.msra.mxu0 0.0
      %275 = vmatprep.mubr.f32.mxu0 0.0
      %276 = vmatmul.mubr.f32.gmra.mrb[0].mxu0 %v196
      %v277 = vpop.f32.mrb[0].mxu0
      %v278 = vadd.f32 0.0, %v277
      %v279 = vpop.f32.mrb[0].mxu0
      %280 = vmatprep.mubr.f32.mxu0 0.0
      %281 = vmatmul.mubr.f32.gmra.mrb[0].mxu0 %v199
      %v282 = vpop.f32.mrb[0].mxu0
      %v283 = vadd.f32 0.0, %v282
      %v284 = vpop.f32.mrb[0].mxu0
      %285 = vmatprep.mubr.f32.mxu0 0.0
      %286 = vmatmul.mubr.f32.gmra.mrb[0].mxu0 %v202
      %v287 = vpop.f32.mrb[0].mxu0
      %v288 = vadd.f32 0.0, %v287
      %v289 = vpop.f32.mrb[0].mxu0
      %290 = vmatprep.mubr.f32.mxu0 0.0
      %291 = vmatmul.mubr.f32.gmra.mrb[0].mxu0 %v205
      %v292 = vpop.f32.mrb[0].mxu0
      %v293 = vadd.f32 0.0, %v292
      %v294 = vpop.f32.mrb[0].mxu0
      %295 = vdwg.mxu0
      %vm296 = vcmask 64512
      %297 = vst.msk [vmem:[%s179] sm:$0xff] %vm296, %v278
      %298 = vst.msk [vmem:[%s179 + $0x8] sm:$0xff] %vm296, %v283
      %299 = vst.msk [vmem:[%s179 + $0x10] sm:$0xff] %vm296, %v288
      %300 = vst.msk [vmem:[%s179 + $0x18] sm:$0xff] %vm296, %v293
      %v301 = vsel %vm296, %v278, 0.0
      %v302 = vsel %vm296, %v283, 0.0
      %v303 = vadd.f32 %v301, %v302
      %v304 = vsel %vm296, %v288, 0.0
      %v305 = vadd.f32 %v303, %v304
      %v306 = vsel %vm296, %v293, 0.0
      %v307 = vadd.f32 %v305, %v306
      %v308 = vrot.slane %v307, 4
      %v309 = vadd.f32 %v307, %v308
      %v310 = vrot.slane %v309, 2
      %v311 = vadd.f32 %v309, %v310
      %v312 = vrot.slane %v311, 1
      %v313 = vadd.f32 %v311, %v312
      %v314 = vmul.f32 %v278, %v278
      %v315 = vmul.f32 %v283, %v283
      %v316 = vmul.f32 %v288, %v288
      %v317 = vmul.f32 %v293, %v293
      %v318 = vsel %vm296, %v314, 0.0
      %v319 = vsel %vm296, %v315, 0.0
      %v320 = vadd.f32 %v318, %v319
      %v321 = vsel %vm296, %v316, 0.0
      %v322 = vadd.f32 %v320, %v321
      %v323 = vsel %vm296, %v317, 0.0
      %v324 = vadd.f32 %v322, %v323
      %v325 = vrot.slane %v324, 4
      %v326 = vadd.f32 %v324, %v325
      %v327 = vrot.slane %v326, 2
      %v328 = vadd.f32 %v326, %v327
      %v329 = vrot.slane %v328, 1
      %v330 = vadd.f32 %v328, %v329
      %vm331 = vcmask 1040384
      %v332 = vsel %vm331, %v313, %v330
      %vm333 = vcmask 58368
      %334 = vst.msk [vmem:[%s184] sm:$0x3] %vm333, %v332
      %s335 = smul.u32 4, %s15
      %p336 = scmp.lt.s32.totalorder %s335, 15
      %s337 = scalar_select %p336, %s335, 15
      %s338 = smul.addr %s337, 8
      %s339 = scalar_lea.vmem %s2, %s338
      %p340 = scmp.lt.s32.totalorder %s15, 3
      %s341 = scalar_select %p340, %s15, 3
      %s342 = smul.addr %s341, 2
      %s343 = scalar_lea.vmem %s3, %s342
      // Predicated region
      $region29: #{shuffle_init_block.2} parent=27 // pred_check
        %p344 = pneg %p80
      $region30: #{shuffle_init_block.2} parent=27 // pred_check_branch
        %346 = sbr.rel (%p344) target = $region32
      $region31: #{shuffle_init_block.2} parent=27 // pred_region
        %s347 = smul.u32 4, %s15
      $region32: #{shuffle_init_block.2} parent=27 // pred_fallthru
        _
      // Predicated region
      $region33: #{shuffle_init_block.2} parent=27 // pred_check
        %p348 = pneg %p106
      $region34: #{shuffle_init_block.2} parent=27 // pred_check_branch
        %350 = sbr.rel (%p348) target = $region36
      $region35: #{shuffle_init_block.2} parent=27 // pred_region
        _
      $region36: #{shuffle_init_block.2} parent=27 // pred_fallthru
        _
    $region28: #{shuffle_init_block.2} parent=5 // pred_fallthru
      _
    %p351 = scmp.le.s32.totalorder 2, %s10
    // Predicated region
    $region37: #{shuffle_init_block.2} parent=5 // pred_check
      %p352 = pneg %p351
    $region38: #{shuffle_init_block.2} parent=5 // pred_check_branch
      %354 = sbr.rel (%p352) target = $region40
    $region39: #{shuffle_init_block.2} parent=5 // pred_region
      %s355 = ssub.s32 %s10, 2
      // Predicated region
      $region41: #{shuffle_init_block.2} parent=39 // pred_check
        %p356 = pneg %p86
      $region42: #{shuffle_init_block.2} parent=39 // pred_check_branch
        %358 = sbr.rel (%p356) target = $region44
      $region43: #{shuffle_init_block.2} parent=39 // pred_region
        %s359 = smul.u32 4, %s16
        %p360 = scmp.lt.s32.totalorder %s359, 15
        %s361 = scalar_select %p360, %s359, 15
        %s362 = smul.addr %s361, 8
        %s363 = scalar_lea.vmem %s2, %s362
      $region44: #{shuffle_init_block.2} parent=39 // pred_fallthru
        _
      // Predicated region
      $region45: #{shuffle_init_block.2} parent=39 // pred_check
        %p364 = pneg %p112
      $region46: #{shuffle_init_block.2} parent=39 // pred_check_branch
        %366 = sbr.rel (%p364) target = $region48
      $region47: #{shuffle_init_block.2} parent=39 // pred_region
        %p367 = scmp.lt.s32.totalorder %s16, 3
        %s368 = scalar_select %p367, %s16, 3
        %s369 = smul.addr %s368, 2
        %s370 = scalar_lea.vmem %s3, %s369
      $region48: #{shuffle_init_block.2} parent=39 // pred_fallthru
        _
    $region40: #{shuffle_init_block.2} parent=5 // pred_fallthru
      _
  $region6: #{shuffle_init_block.2} parent=0 // loop_footer
    %s14 = sadd.s32 1, %s10
  $region7: #{shuffle_init_block.2} parent=0 // loop_footer_branch
    %9 = sbr.rel target = $region3
  $region8: #{shuffle_init_block.2} parent=0 // loop_exit
    _

// kernel: shuffle_init_block.3
$region0: #{shuffle_init_block.3}
  #allocation0 [shape = 'u32[]', space=smem, size = 0x4, offset = 0x4, fixed_abs, tag = 'smem constant byte address 0x4 - core index']
  #allocation1 [shape = 'u32[144,128]{1,0:T(1,128)}', space=vmem, size = 0x12000, scoped, tag = 'internal scratch']
  #allocation2 [shape = 'f32[2,10,10,8]{3,2,1,0:T(8,128)}', space=vmem, size = 0x28000, scoped, tag = 'scratch operand']
  #allocation3 [shape = 'f32[2,4,10,8]{3,2,1,0:T(8,128)}', space=vmem, size = 0x10000, scoped, tag = 'scratch operand']
  %s0 = inlined_call_operand.vmem [shape: f32[2,8,8,8], index: 0, kind: input, shape index: {}]
  %s1 = inlined_call_operand.vmem [shape: f32[1,8], index: 1, kind: input, shape index: {}]
  %s2 = inlined_call_operand.vmem [shape: f32[1,8], index: 2, kind: input, shape index: {}]
  %s3 = inlined_call_operand.hbm [shape: f32[2,4,4,8], index: 3, kind: output, shape index: {}]
  %s4 = sld [smem:[#allocation0]]
  $region22: #{shuffle_init_block.3} parent=0
    _
  %s6 = ssub.s32 1, %s4
  %s7 = scalar_select 0, %s6, %s4
  $region1: #{shuffle_init_block.3} parent=0
    #allocation4 [shape = 'u8[16384]{0}', space=vmem, size = 0x4000, scoped, tag = 'output window, operand 0, single buffered']
    #allocation5 [shape = 's32[1]{0}', space=sflag, size = 0x4, scoped, tag = 'scoped memory for shuffle_init_block.3']
    %8 = vsyncpa [#allocation5], 0
    // Predicated region
    $region2: #{shuffle_init_block.3} parent=1 // pred_check
      _
    $region3: #{shuffle_init_block.3} parent=1 // pred_check_branch
      %10 = sbr.rel (0) target = $region5
    $region4: #{shuffle_init_block.3} parent=1 // pred_region
      _
    $region5: #{shuffle_init_block.3} parent=1 // pred_fallthru
      _
    // Predicated region
    $region6: #{shuffle_init_block.3} parent=1 // pred_check
      _
    $region7: #{shuffle_init_block.3} parent=1 // pred_check_branch
      %12 = sbr.rel (0) target = $region9
    $region8: #{shuffle_init_block.3} parent=1 // pred_region
      _
    $region9: #{shuffle_init_block.3} parent=1 // pred_fallthru
      _
    // Predicated region
    $region10: #{shuffle_init_block.3} parent=1 // pred_check
      _
    $region11: #{shuffle_init_block.3} parent=1 // pred_check_branch
      %14 = sbr.rel (0) target = $region13
    $region12: #{shuffle_init_block.3} parent=1 // pred_region
      _
    $region13: #{shuffle_init_block.3} parent=1 // pred_fallthru
      _
    %v15 = vld [vmem:[%s0] sm:$0xff]
    %v16 = vld [vmem:[%s0 + $0x8] sm:$0xff]
    %v17 = vld [vmem:[%s0 + $0x10] sm:$0xff]
    %v18 = vld [vmem:[%s0 + $0x18] sm:$0xff]
    %v19 = vld [vmem:[%s0 + $0x20] sm:$0xff]
    %v20 = vld [vmem:[%s0 + $0x28] sm:$0xff]
    %v21 = vld [vmem:[%s0 + $0x30] sm:$0xff]
    %v22 = vld [vmem:[%s0 + $0x38] sm:$0xff]
    %v23 = vld [vmem:[%s0 + $0x40] sm:$0xff]
    %v24 = vld [vmem:[%s0 + $0x48] sm:$0xff]
    %v25 = vld [vmem:[%s0 + $0x50] sm:$0xff]
    %v26 = vld [vmem:[%s0 + $0x58] sm:$0xff]
    %v27 = vld [vmem:[%s0 + $0x60] sm:$0xff]
    %v28 = vld [vmem:[%s0 + $0x68] sm:$0xff]
    %v29 = vld [vmem:[%s0 + $0x70] sm:$0xff]
    %v30 = vld [vmem:[%s0 + $0x78] sm:$0xff]
    %v31 = vld [vmem:[%s1] sm:$0x1]
    %v33 = vlaneseq
    %v34 = vshrl.u32 %v33, 7
    %v35 = vsub.s32 0, %v34
    %v36 = vrot.slane %v31, %v35
    %v38 = vmul.f32 %v15, %v36
    %v39 = vmul.f32 %v16, %v36
    %v40 = vmul.f32 %v17, %v36
    %v41 = vmul.f32 %v18, %v36
    %v42 = vmul.f32 %v19, %v36
    %v43 = vmul.f32 %v20, %v36
    %v44 = vmul.f32 %v21, %v36
    %v45 = vmul.f32 %v22, %v36
    %v46 = vmul.f32 %v23, %v36
    %v47 = vmul.f32 %v24, %v36
    %v48 = vmul.f32 %v25, %v36
    %v49 = vmul.f32 %v26, %v36
    %v50 = vmul.f32 %v27, %v36
    %v51 = vmul.f32 %v28, %v36
    %v52 = vmul.f32 %v29, %v36
    %v53 = vmul.f32 %v30, %v36
    %v54 = vld [vmem:[%s2] sm:$0x1]
    %v56 = vlaneseq
    %v57 = vshrl.u32 %v56, 7
    %v58 = vsub.s32 0, %v57
    %v59 = vrot.slane %v54, %v58
    %v61 = vadd.f32 %v38, %v59
    %v62 = vadd.f32 %v39, %v59
    %v63 = vadd.f32 %v40, %v59
    %v64 = vadd.f32 %v41, %v59
    %v65 = vadd.f32 %v42, %v59
    %v66 = vadd.f32 %v43, %v59
    %v67 = vadd.f32 %v44, %v59
    %v68 = vadd.f32 %v45, %v59
    %v69 = vadd.f32 %v46, %v59
    %v70 = vadd.f32 %v47, %v59
    %v71 = vadd.f32 %v48, %v59
    %v72 = vadd.f32 %v49, %v59
    %v73 = vadd.f32 %v50, %v59
    %v74 = vadd.f32 %v51, %v59
    %v75 = vadd.f32 %v52, %v59
    %v76 = vadd.f32 %v53, %v59
    %v77 = vmax.f32 %v61, 0.0
    %v78 = vmax.f32 %v62, 0.0
    %v79 = vmax.f32 %v63, 0.0
    %v80 = vmax.f32 %v64, 0.0
    %v81 = vmax.f32 %v65, 0.0
    %v82 = vmax.f32 %v66, 0.0
    %v83 = vmax.f32 %v67, 0.0
    %v84 = vmax.f32 %v68, 0.0
    %v85 = vmax.f32 %v69, 0.0
    %v86 = vmax.f32 %v70, 0.0
    %v87 = vmax.f32 %v71, 0.0
    %v88 = vmax.f32 %v72, 0.0
    %v89 = vmax.f32 %v73, 0.0
    %v90 = vmax.f32 %v74, 0.0
    %v91 = vmax.f32 %v75, 0.0
    %v92 = vmax.f32 %v76, 0.0
    %vm93 = vcmask 64512
    %94 = vst.msk [vmem:[#allocation2] sm:$0xff] %vm93, 0.0
    %vm95 = vcmask 58368
    %96 = vst.msk [vmem:[#allocation2 + $0x8] sm:$0x3] %vm95, 0.0
    %97 = vst.msk [vmem:[#allocation2 + $0xa0] sm:$0xff] %vm93, 0.0
    %98 = vst.msk [vmem:[#allocation2 + $0xa8] sm:$0x3] %vm95, 0.0
    %s99 = scalar_lea.vmem [#allocation2], 144
    %100 = vst.msk [vmem:[%s99] sm:$0xff] %vm93, 0.0
    %101 = vst.msk [vmem:[%s99 + $0x8] sm:$0x3] %vm95, 0.0
    %102 = vst.msk [vmem:[%s99 + $0xa0] sm:$0xff] %vm93, 0.0
    %103 = vst.msk [vmem:[%s99 + $0xa8] sm:$0x3] %vm95, 0.0
    %s104 = scalar_lea.vmem [#allocation2], 16
    %vm105 = vcmask 57344
    %106 = vst.msk [vmem:[%s104] sm:$0x1] %vm105, 0.0
    %107 = vst.msk [vmem:[%s104 + $0x10] sm:$0x1] %vm105, 0.0
    %108 = vst.msk [vmem:[%s104 + $0x20] sm:$0x1] %vm105, 0.0
    %109 = vst.msk [vmem:[%s104 + $0x30] sm:$0x1] %vm105, 0.0
    %110 = vst.msk [vmem:[%s104 + $0x40] sm:$0x1] %vm105, 0.0
    %111 = vst.msk [vmem:[%s104 + $0x50] sm:$0x1] %vm105, 0.0
    %112 = vst.msk [vmem:[%s104 + $0x60] sm:$0x1] %vm105, 0.0
    %113 = vst.msk [vmem:[%s104 + $0x70] sm:$0x1] %vm105, 0.0
    %114 = vst.msk [vmem:[%s104 + $0xa0] sm:$0x1] %vm105, 0.0
    %115 = vst.msk [vmem:[%s104 + $0xb0] sm:$0x1] %vm105, 0.0
    %116 = vst.msk [vmem:[%s104 + $0xc0] sm:$0x1] %vm105, 0.0
    %117 = vst.msk [vmem:[%s104 + $0xd0] sm:$0x1] %vm105, 0.0
    %118 = vst.msk [vmem:[%s104 + $0xe0] sm:$0x1] %vm105, 0.0
    %119 = vst.msk [vmem:[%s104 + $0xf0] sm:$0x1] %vm105, 0.0
    %120 = vst.msk [vmem:[%s104 + $0x100] sm:$0x1] %vm105, 0.0
    %121 = vst.msk [vmem:[%s104 + $0x110] sm:$0x1] %vm105, 0.0
    %122 = vst.msk [vmem:[%s104 + $0x9] sm:$0x1] %vm105, 0.0
    %123 = vst.msk [vmem:[%s104 + $0x19] sm:$0x1] %vm105, 0.0
    %124 = vst.msk [vmem:[%s104 + $0x29] sm:$0x1] %vm105, 0.0
    %125 = vst.msk [vmem:[%s104 + $0x39] sm:$0x1] %vm105, 0.0
    %126 = vst.msk [vmem:[%s104 + $0x49] sm:$0x1] %vm105, 0.0
    %127 = vst.msk [vmem:[%s104 + $0x59] sm:$0x1] %vm105, 0.0
    %128 = vst.msk [vmem:[%s104 + $0x69] sm:$0x1] %vm105, 0.0
    %129 = vst.msk [vmem:[%s104 + $0x79] sm:$0x1] %vm105, 0.0
    %130 = vst.msk [vmem:[%s104 + $0xa9] sm:$0x1] %vm105, 0.0
    %131 = vst.msk [vmem:[%s104 + $0xb9] sm:$0x1] %vm105, 0.0
    %132 = vst.msk [vmem:[%s104 + $0xc9] sm:$0x1] %vm105, 0.0
    %133 = vst.msk [vmem:[%s104 + $0xd9] sm:$0x1] %vm105, 0.0
    %134 = vst.msk [vmem:[%s104 + $0xe9] sm:$0x1] %vm105, 0.0
    %135 = vst.msk [vmem:[%s104 + $0xf9] sm:$0x1] %vm105, 0.0
    %136 = vst.msk [vmem:[%s104 + $0x109] sm:$0x1] %vm105, 0.0
    %137 = vst.msk [vmem:[%s104 + $0x119] sm:$0x1] %vm105, 0.0
    %138 = vst.msk [vmem:[%s104 + $0x1] sm:$0xff] %vm93, %v77
    %139 = vst.msk [vmem:[%s104 + $0x11] sm:$0xff] %vm93, %v78
    %140 = vst.msk [vmem:[%s104 + $0x21] sm:$0xff] %vm93, %v79
    %141 = vst.msk [vmem:[%s104 + $0x31] sm:$0xff] %vm93, %v80
    %142 = vst.msk [vmem:[%s104 + $0x41] sm:$0xff] %vm93, %v81
    %143 = vst.msk [vmem:[%s104 + $0x51] sm:$0xff] %vm93, %v82
    %144 = vst.msk [vmem:[%s104 + $0x61] sm:$0xff] %vm93, %v83
    %145 = vst.msk [vmem:[%s104 + $0x71] sm:$0xff] %vm93, %v84
    %146 = vst.msk [vmem:[%s104 + $0xa1] sm:$0xff] %vm93, %v85
    %147 = vst.msk [vmem:[%s104 + $0xb1] sm:$0xff] %vm93, %v86
    %148 = vst.msk [vmem:[%s104 + $0xc1] sm:$0xff] %vm93, %v87
    %149 = vst.msk [vmem:[%s104 + $0xd1] sm:$0xff] %vm93, %v88
    %150 = vst.msk [vmem:[%s104 + $0xe1] sm:$0xff] %vm93, %v89
    %151 = vst.msk [vmem:[%s104 + $0xf1] sm:$0xff] %vm93, %v90
    %152 = vst.msk [vmem:[%s104 + $0x101] sm:$0xff] %vm93, %v91
    %153 = vst.msk [vmem:[%s104 + $0x111] sm:$0xff] %vm93, %v92
    %v154 = vld [vmem:[#allocation2] sm:$0xff]
    %v155 = vld [vmem:[#allocation2 + $0x8] sm:$0x3]
    %v156 = vld [vmem:[#allocation2 + $0x20] sm:$0xff]
    %v157 = vld [vmem:[#allocation2 + $0x28] sm:$0x3]
    %v158 = vld [vmem:[#allocation2 + $0x40] sm:$0xff]
    %v159 = vld [vmem:[#allocation2 + $0x48] sm:$0x3]
    %v160 = vld [vmem:[#allocation2 + $0x60] sm:$0xff]
    %v161 = vld [vmem:[#allocation2 + $0x68] sm:$0x3]
    %v162 = vld [vmem:[#allocation2 + $0xa0] sm:$0xff]
    %v163 = vld [vmem:[#allocation2 + $0xa8] sm:$0x3]
    %v164 = vld [vmem:[#allocation2 + $0xc0] sm:$0xff]
    %v165 = vld [vmem:[#allocation2 + $0xc8] sm:$0x3]
    %v166 = vld [vmem:[#allocation2 + $0xe0] sm:$0xff]
    %v167 = vld [vmem:[#allocation2 + $0xe8] sm:$0x3]
    %v168 = vld [vmem:[#allocation2 + $0x100] sm:$0xff]
    %v169 = vld [vmem:[#allocation2 + $0x108] sm:$0x3]
    %v170 = vld [vmem:[%s104] sm:$0xff]
    %v171 = vld [vmem:[%s104 + $0x8] sm:$0x3]
    %v172 = vld [vmem:[%s104 + $0x20] sm:$0xff]
    %v173 = vld [vmem:[%s104 + $0x28] sm:$0x3]
    %v174 = vld [vmem:[%s104 + $0x40] sm:$0xff]
    %v175 = vld [vmem:[%s104 + $0x48] sm:$0x3]
    %v176 = vld [vmem:[%s104 + $0x60] sm:$0xff]
    %v177 = vld [vmem:[%s104 + $0x68] sm:$0x3]
    %v178 = vld [vmem:[%s104 + $0xa0] sm:$0xff]
    %v179 = vld [vmem:[%s104 + $0xa8] sm:$0x3]
    %v180 = vld [vmem:[%s104 + $0xc0] sm:$0xff]
    %v181 = vld [vmem:[%s104 + $0xc8] sm:$0x3]
    %v182 = vld [vmem:[%s104 + $0xe0] sm:$0xff]
    %v183 = vld [vmem:[%s104 + $0xe8] sm:$0x3]
    %v184 = vld [vmem:[%s104 + $0x100] sm:$0xff]
    %v185 = vld [vmem:[%s104 + $0x108] sm:$0x3]
    %v186 = vmax.f32 %v154, %v170
    %v187 = vmax.f32 %v155, %v171
    %v188 = vmax.f32 %v156, %v172
    %v189 = vmax.f32 %v157, %v173
    %v190 = vmax.f32 %v158, %v174
    %v191 = vmax.f32 %v159, %v175
    %v192 = vmax.f32 %v160, %v176
    %v193 = vmax.f32 %v161, %v177
    %v194 = vmax.f32 %v162, %v178
    %v195 = vmax.f32 %v163, %v179
    %v196 = vmax.f32 %v164, %v180
    %v197 = vmax.f32 %v165, %v181
    %v198 = vmax.f32 %v166, %v182
    %v199 = vmax.f32 %v167, %v183
    %v200 = vmax.f32 %v168, %v184
    %v201 = vmax.f32 %v169, %v185
    %s202 = scalar_lea.vmem [#allocation2], 32
    %v203 = vld [vmem:[%s202] sm:$0xff]
    %v204 = vld [vmem:[%s202 + $0x8] sm:$0x3]
    %v205 = vld [vmem:[%s202 + $0x20] sm:$0xff]
    %v206 = vld [vmem:[%s202 + $0x28] sm:$0x3]
    %v207 = vld [vmem:[%s202 + $0x40] sm:$0xff]
    %v208 = vld [vmem:[%s202 + $0x48] sm:$0x3]
    %v209 = vld [vmem:[%s202 + $0x60] sm:$0xff]
    %v210 = vld [vmem:[%s202 + $0x68] sm:$0x3]
    %v211 = vld [vmem:[%s202 + $0xa0] sm:$0xff]
    %v212 = vld [vmem:[%s202 + $0xa8] sm:$0x3]
    %v213 = vld [vmem:[%s202 + $0xc0] sm:$0xff]
    %v214 = vld [vmem:[%s202 + $0xc8] sm:$0x3]
    %v215 = vld [vmem:[%s202 + $0xe0] sm:$0xff]
    %v216 = vld [vmem:[%s202 + $0xe8] sm:$0x3]
    %v217 = vld [vmem:[%s202 + $0x100] sm:$0xff]
    %v218 = vld [vmem:[%s202 + $0x108] sm:$0x3]
    %v219 = vmax.f32 %v186, %v203
    %v220 = vmax.f32 %v187, %v204
    %v221 = vmax.f32 %v188, %v205
    %v222 = vmax.f32 %v189, %v206
    %v223 = vmax.f32 %v190, %v207
    %v224 = vmax.f32 %v191, %v208
    %v225 = vmax.f32 %v192, %v209
    %v226 = vmax.f32 %v193, %v210
    %v227 = vmax.f32 %v194, %v211
    %v228 = vmax.f32 %v195, %v212
    %v229 = vmax.f32 %v196, %v213
    %v230 = vmax.f32 %v197, %v214
    %v231 = vmax.f32 %v198, %v215
    %v232 = vmax.f32 %v199, %v216
    %v233 = vmax.f32 %v200, %v217
    %v234 = vmax.f32 %v201, %v218
    %235 = vst.msk [vmem:[#allocation3] sm:$0xff] %vm93, %v219
    %236 = vst.msk [vmem:[#allocation3 + $0x8] sm:$0x3] %vm95, %v220
    %237 = vst.msk [vmem:[#allocation3 + $0x10] sm:$0xff] %vm93, %v221
    %238 = vst.msk [vmem:[#allocation3 + $0x18] sm:$0x3] %vm95, %v222
    %239 = vst.msk [vmem:[#allocation3 + $0x20] sm:$0xff] %vm93, %v223
    %240 = vst.msk [vmem:[#allocation3 + $0x28] sm:$0x3] %vm95, %v224
    %241 = vst.msk [vmem:[#allocation3 + $0x30] sm:$0xff] %vm93, %v225
    %242 = vst.msk [vmem:[#allocation3 + $0x38] sm:$0x3] %vm95, %v226
    %243 = vst.msk [vmem:[#allocation3 + $0x40] sm:$0xff] %vm93, %v227
    %244 = vst.msk [vmem:[#allocation3 + $0x48] sm:$0x3] %vm95, %v228
    %245 = vst.msk [vmem:[#allocation3 + $0x50] sm:$0xff] %vm93, %v229
    %246 = vst.msk [vmem:[#allocation3 + $0x58] sm:$0x3] %vm95, %v230
    %247 = vst.msk [vmem:[#allocation3 + $0x60] sm:$0xff] %vm93, %v231
    %248 = vst.msk [vmem:[#allocation3 + $0x68] sm:$0x3] %vm95, %v232
    %249 = vst.msk [vmem:[#allocation3 + $0x70] sm:$0xff] %vm93, %v233
    %250 = vst.msk [vmem:[#allocation3 + $0x78] sm:$0x3] %vm95, %v234
    %v251 = vld [vmem:[#allocation3] ss:$2 sm:$0xf]
    %s252 = scalar_lea.vmem [#allocation3], 16
    %v253 = vld [vmem:[%s252] ss:$2 sm:$0xf]
    %s254 = scalar_lea.vmem [#allocation3], 32
    %v255 = vld [vmem:[%s254] ss:$2 sm:$0xf]
    %s256 = scalar_lea.vmem [#allocation3], 48
    %v257 = vld [vmem:[%s256] ss:$2 sm:$0xf]
    %s258 = scalar_lea.vmem [#allocation3], 64
    %v259 = vld [vmem:[%s258] ss:$2 sm:$0xf]
    %s260 = scalar_lea.vmem [#allocation3], 80
    %v261 = vld [vmem:[%s260] ss:$2 sm:$0xf]
    %s262 = scalar_lea.vmem [#allocation3], 96
    %v263 = vld [vmem:[%s262] ss:$2 sm:$0xf]
    %s264 = scalar_lea.vmem [#allocation3], 112
    %v265 = vld [vmem:[%s264] ss:$2 sm:$0xf]
    %s266 = scalar_lea.vmem [#allocation3], 1
    %v267 = vld [vmem:[%s266] ss:$2 sm:$0xf]
    %s268 = scalar_lea.vmem [#allocation3], 17
    %v269 = vld [vmem:[%s268] ss:$2 sm:$0xf]
    %s270 = scalar_lea.vmem [#allocation3], 33
    %v271 = vld [vmem:[%s270] ss:$2 sm:$0xf]
    %s272 = scalar_lea.vmem [#allocation3], 49
    %v273 = vld [vmem:[%s272] ss:$2 sm:$0xf]
    %s274 = scalar_lea.vmem [#allocation3], 65
    %v275 = vld [vmem:[%s274] ss:$2 sm:$0xf]
    %s276 = scalar_lea.vmem [#allocation3], 81
    %v277 = vld [vmem:[%s276] ss:$2 sm:$0xf]
    %s278 = scalar_lea.vmem [#allocation3], 97
    %v279 = vld [vmem:[%s278] ss:$2 sm:$0xf]
    %s280 = scalar_lea.vmem [#allocation3], 113
    %v281 = vld [vmem:[%s280] ss:$2 sm:$0xf]
    %v282 = vmax.f32 %v251, %v267
    %v283 = vmax.f32 %v253, %v269
    %v284 = vmax.f32 %v255, %v271
    %v285 = vmax.f32 %v257, %v273
    %v286 = vmax.f32 %v259, %v275
    %v287 = vmax.f32 %v261, %v277
    %v288 = vmax.f32 %v263, %v279
    %v289 = vmax.f32 %v265, %v281
    %s290 = scalar_lea.vmem [#allocation3], 2
    %v291 = vld [vmem:[%s290] ss:$2 sm:$0xf]
    %s292 = scalar_lea.vmem [#allocation3], 18
    %v293 = vld [vmem:[%s292] ss:$2 sm:$0xf]
    %s294 = scalar_lea.vmem [#allocation3], 34
    %v295 = vld [vmem:[%s294] ss:$2 sm:$0xf]
    %s296 = scalar_lea.vmem [#allocation3], 50
    %v297 = vld [vmem:[%s296] ss:$2 sm:$0xf]
    %s298 = scalar_lea.vmem [#allocation3], 66
    %v299 = vld [vmem:[%s298] ss:$2 sm:$0xf]
    %s300 = scalar_lea.vmem [#allocation3], 82
    %v301 = vld [vmem:[%s300] ss:$2 sm:$0xf]
    %s302 = scalar_lea.vmem [#allocation3], 98
    %v303 = vld [vmem:[%s302] ss:$2 sm:$0xf]
    %s304 = scalar_lea.vmem [#allocation3], 114
    %v305 = vld [vmem:[%s304] ss:$2 sm:$0xf]
    %v306 = vmax.f32 %v282, %v291
    %v307 = vmax.f32 %v283, %v293
    %v308 = vmax.f32 %v284, %v295
    %v309 = vmax.f32 %v285, %v297
    %v310 = vmax.f32 %v286, %v299
    %v311 = vmax.f32 %v287, %v301
    %v312 = vmax.f32 %v288, %v303
    %v313 = vmax.f32 %v289, %v305
    %vm314 = vcmask 60416
    %315 = vst.msk [vmem:[#allocation4] sm:$0xf] %vm314, %v306
    %316 = vst.msk [vmem:[#allocation4 + $0x4] sm:$0xf] %vm314, %v307
    %317 = vst.msk [vmem:[#allocation4 + $0x8] sm:$0xf] %vm314, %v308
    %318 = vst.msk [vmem:[#allocation4 + $0xc] sm:$0xf] %vm314, %v309
    %319 = vst.msk [vmem:[#allocation4 + $0x10] sm:$0xf] %vm314, %v310
    %320 = vst.msk [vmem:[#allocation4 + $0x14] sm:$0xf] %vm314, %v311
    %321 = vst.msk [vmem:[#allocation4 + $0x18] sm:$0xf] %vm314, %v312
    %322 = vst.msk [vmem:[#allocation4 + $0x1c] sm:$0xf] %vm314, %v313
    // Predicated region
    $region14: #{shuffle_init_block.3} parent=1 // pred_check
      _
    $region15: #{shuffle_init_block.3} parent=1 // pred_check_branch
      %324 = sbr.rel (0) target = $region17
    $region16: #{shuffle_init_block.3} parent=1 // pred_region
      %s326 = ssub.s32 512, 512
      %327 = vsyncadd [#allocation5], %s326
      %s328 = sshll.u32 [#allocation4], 4
      %s329 = int_to_ptr.vmem [resolvable:$true] %s328
      %334 = dma.vmem_to_hbm [thread:$0]  %s329, 512, %s3, [#allocation5], 64, 64, 4
    $region17: #{shuffle_init_block.3} parent=1 // pred_fallthru
      _
    // Predicated region
    $region18: #{shuffle_init_block.3} parent=1 // pred_check
      _
    $region19: #{shuffle_init_block.3} parent=1 // pred_check_branch
      %336 = sbr.rel (0) target = $region21
    $region20: #{shuffle_init_block.3} parent=1 // pred_region
      %337 = dma.done [#allocation5], 512
    $region21: #{shuffle_init_block.3} parent=1 // pred_fallthru
      _
    %338 = vsyncpa [#allocation5], 1

</llo_original>
